<compile_context>
chip_gen: v6e
topology: v6e:2x2x1
jax: 0.10.0
libtpu: 0.0.40
codegen_flags: <defaults>
</compile_context>

<pallas_src>
import functools

import jax
import jax.numpy as jnp
from jax.experimental import pallas as pl
from jax.experimental.pallas import tpu as pltpu

LANE = 128
SUBLANE = 8


def _round_up(x, m):
    return ((x + m - 1) // m) * m


def _round_down(x, m):
    return (x // m) * m


def _vmem_capacity_bytes():
    try:
        return int(pltpu.get_tpu_info().vmem_capacity_bytes)
    except Exception:
        return 64 << 20            # conservative: v7x per-TensorCore VMEM


def _pass2_tiles(rows, hw, itemsize, budget):
    """Row/column block for the (rows, hw) elementwise scale pass.

    Sized so 4 live blocks (input + output, double-buffered) fit `budget`
    bytes.  Row block is a multiple of 8 (or the full extent); column block
    is a multiple of 128 (or the full extent)."""
    per_block = max(budget // 4, 1 << 20)
    if rows * hw * itemsize <= per_block:
        return rows, hw
    if SUBLANE * hw * itemsize <= per_block:
        t = hw
    else:
        t = max(_round_down(per_block // (SUBLANE * itemsize), LANE), LANE)
        t = min(t, _round_up(hw, LANE))
    r_fit = max(per_block // (t * itemsize), 1)
    if r_fit >= rows or rows <= SUBLANE:
        r = rows
    else:
        r = max(_round_down(min(r_fit, rows), SUBLANE), SUBLANE)
    return r, t


def _pass1_tiles(B, C1, hw1, itemsize, budget):
    """Batch block / spatial tile / padded spatial extent for the pool pass.

    Sized so 2 double-buffered (tb, C1, tile1) f_n1 blocks fit `budget`."""
    per_block = max(budget // 2, 1 << 20)
    row_bytes = C1 * itemsize
    tb_min = B if B <= SUBLANE else SUBLANE
    if tb_min * row_bytes * hw1 <= per_block or hw1 <= LANE:
        tile1, hw1_pad = hw1, hw1
    else:
        tile1 = max(_round_down(per_block // (tb_min * row_bytes), LANE), LANE)
        tile1 = min(tile1, _round_up(hw1, LANE))
        hw1_pad = _round_up(hw1, tile1)
    if B <= SUBLANE:
        tb = B
    else:
        fit = max(per_block // (row_bytes * tile1), SUBLANE)
        # Keep >= 2 batch blocks so the parallel axis can shard TensorCores.
        tb = min(_round_down(fit, SUBLANE), _round_up(-(-B // 2), SUBLANE), B)
        tb = max(tb, SUBLANE)
        if tb >= B:
            tb = B
    return tb, tile1, hw1_pad


# ---------------- Pass 1: squeeze-excitation (attention vector) ----------------
def _se_kernel(fn1_ref, wc_t_ref, bc_ref, w1_t_ref, b1_ref, w2_t_ref, b2_ref,
               a_ref, acc_ref, *, inv_hw1):
    # fn1_ref : (tb, C1, T1) spatial tile of f_n1 (zero-padded along space)
    # wc_t    : (C1, C)   bc: (1, C)
    # w1_t    : (C, Cr)   b1: (1, Cr)
    # w2_t    : (Cr, C)   b2: (1, C)
    # a_ref   : (tb, C) attention output (written on the last spatial step)
    # acc_ref : (tb, C1) VMEM accumulator of spatial sums
    t = pl.program_id(1)

    @pl.when(t == 0)
    def _():
        acc_ref[...] = jnp.zeros_like(acc_ref)

    # Partial spatial sum; widening fused into the reduce, zero padding exact.
    acc_ref[...] += jnp.sum(fn1_ref[...], axis=2, dtype=jnp.float32)

    @pl.when(t == pl.num_programs(1) - 1)
    def _():
        # Global average pool.  Pool-then-1x1-conv == conv-then-pool for a
        # linear 1x1 conv + bias, so this matches the PyTorch forward exactly.
        pooled = acc_ref[...] * inv_hw1                                   # (tb, C1)
        y = jnp.dot(pooled, wc_t_ref[...],
                    preferred_element_type=jnp.float32) + bc_ref[...]     # (tb, C)
        h = jnp.dot(y, w1_t_ref[...],
                    preferred_element_type=jnp.float32) + b1_ref[...]     # (tb, Cr)
        h = jnp.maximum(h, 0.0)
        z = jnp.dot(h, w2_t_ref[...],
                    preferred_element_type=jnp.float32) + b2_ref[...]     # (tb, C)
        a_ref[...] = 1.0 / (1.0 + jnp.exp(-z))                            # sigmoid


# ---------------- Pass 2: per-row broadcast multiply ----------------
def _scale_kernel(a_ref, x_ref, o_ref):
    # a_ref: (R, 1) per-row attention (already in x's dtype); x/o: (R, T).
    o_ref[...] = x_ref[...] * a_ref[...]


def channel_attention(f_n, f_n1, params):
    B, C, H, W = f_n.shape
    Bn1, C1, H1, W1 = f_n1.shape
    assert B == Bn1
    Cr = params["fc1_w"].shape[0]

    HW, HW1 = H * W, H1 * W1
    cap = _vmem_capacity_bytes()

    # PyTorch layouts: Conv2d 1x1 weight (C, C1), Linear weight (out, in).
    # Pre-transpose once so in-kernel matmuls are plain (rows, K) @ (K, N).
    wc_t = params["conv_w"].T.astype(jnp.float32)            # (C1, C)
    w1_t = params["fc1_w"].T.astype(jnp.float32)             # (C, Cr)
    w2_t = params["fc2_w"].T.astype(jnp.float32)             # (Cr, C)
    bc = params["conv_b"].reshape(1, C).astype(jnp.float32)
    b1 = params["fc1_b"].reshape(1, Cr).astype(jnp.float32)
    b2 = params["fc2_b"].reshape(1, C).astype(jnp.float32)

    # ---- Pass 1: compute the (B, C) attention vector (batched matmuls).
    item1 = jnp.dtype(f_n1.dtype).itemsize
    tb, tile1, hw1_pad = _pass1_tiles(B, C1, HW1, item1, budget=int(0.3 * cap))
    fn1_2d = f_n1.reshape(B, C1, HW1)
    if hw1_pad != HW1:
        # Zero-pad so out-of-bounds lanes never enter the spatial reduction.
        fn1_2d = jnp.pad(fn1_2d, ((0, 0), (0, 0), (0, hw1_pad - HW1)))

    n_b = pl.cdiv(B, tb)
    n_t1 = hw1_pad // tile1
    blk1 = tb * C1 * tile1 * item1
    vmem1 = int(min(max(2 * blk1 + (8 << 20), 16 << 20), int(0.9 * cap)))

    attn = pl.pallas_call(
        functools.partial(_se_kernel, inv_hw1=1.0 / HW1),
        out_shape=jax.ShapeDtypeStruct((B, C), jnp.float32),
        grid=(n_b, n_t1),
        in_specs=[
            pl.BlockSpec((tb, C1, tile1), lambda b, t: (b, 0, t)),   # f_n1 tile
            pl.BlockSpec((C1, C), lambda b, t: (0, 0)),              # conv w^T
            pl.BlockSpec((1, C), lambda b, t: (0, 0)),               # conv b
            pl.BlockSpec((C, Cr), lambda b, t: (0, 0)),              # fc1 w^T
            pl.BlockSpec((1, Cr), lambda b, t: (0, 0)),              # fc1 b
            pl.BlockSpec((Cr, C), lambda b, t: (0, 0)),              # fc2 w^T
            pl.BlockSpec((1, C), lambda b, t: (0, 0)),               # fc2 b
        ],
        out_specs=pl.BlockSpec((tb, C), lambda b, t: (b, 0)),
        scratch_shapes=[pltpu.VMEM((tb, C1), jnp.float32)],
        compiler_params=pltpu.CompilerParams(
            dimension_semantics=("parallel", "arbitrary"),
            vmem_limit_bytes=vmem1),
    )(fn1_2d, wc_t, bc, w1_t, b1, w2_t, b2)

    # ---- Pass 2: per-row broadcast multiply on (B*C, H*W); no pad, no slice.
    rows = B * C
    item = jnp.dtype(f_n.dtype).itemsize
    r, t = _pass2_tiles(rows, HW, item, budget=int(0.6 * cap))
    n_r, n_t = pl.cdiv(rows, r), pl.cdiv(HW, t)

    fn_rows = f_n.reshape(rows, HW)                      # free reshape
    a_rows = attn.astype(f_n.dtype).reshape(rows, 1)     # one tiny cast

    blk2 = r * t * item
    vmem2 = int(min(max(4 * blk2 + (4 << 20), 16 << 20), int(0.9 * cap)))

    out = pl.pallas_call(
        _scale_kernel,
        out_shape=jax.ShapeDtypeStruct((rows, HW), f_n.dtype),
        grid=(n_r, n_t),
        in_specs=[
            pl.BlockSpec((r, 1), lambda i, j: (i, 0)),     # attention rows
            pl.BlockSpec((r, t), lambda i, j: (i, j)),     # f_n row tile
        ],
        out_specs=pl.BlockSpec((r, t), lambda i, j: (i, j)),
        compiler_params=pltpu.CompilerParams(
            dimension_semantics=("parallel", "parallel"),
            vmem_limit_bytes=vmem2),
    )(a_rows, fn_rows)

    return out.reshape(B, C, H, W)


def reference(f_n, f_n1, p):
    # Pure-JAX reference of the PyTorch forward.
    y = jnp.einsum("bchw,oc->bohw", f_n1, p["conv_w"]) \
        + p["conv_b"][None, :, None, None]
    y = y.mean(axis=(2, 3))                                   # (B, C)
    h = jnp.maximum(y @ p["fc1_w"].T + p["fc1_b"], 0.0)
    a = jax.nn.sigmoid(h @ p["fc2_w"].T + p["fc2_b"])
    return a[:, :, None, None] * f_n


if __name__ == "__main__":
    # f_n: (B, C, H, W) = (2, 8, 16, 16); f_n1: (B, C1, H1, W1) = (2, 16, 8, 8)
    B, C, H, W = 2, 8, 16, 16
    C1, H1, W1 = 16, 8, 8
    reduction_ratio = 4
    Cr = C // reduction_ratio

    key = jax.random.PRNGKey(0)
    k_fn, k_fn1, k_wc, k_bc, k_w1, k_b1, k_w2, k_b2 = jax.random.split(key, 8)

    f_n = jax.random.normal(k_fn, (B, C, H, W), dtype=jnp.float32)
    f_n1 = jax.random.normal(k_fn1, (B, C1, H1, W1), dtype=jnp.float32)

    # Parameters in PyTorch layouts: Conv2d 1x1 weight (C, C1),
    # Linear weights (out_features, in_features).
    params = {
        "conv_w": 0.1 * jax.random.normal(k_wc, (C, C1), dtype=jnp.float32),
        "conv_b": 0.1 * jax.random.normal(k_bc, (C,), dtype=jnp.float32),
        "fc1_w": 0.1 * jax.random.normal(k_w1, (Cr, C), dtype=jnp.float32),
        "fc1_b": 0.1 * jax.random.normal(k_b1, (Cr,), dtype=jnp.float32),
        "fc2_w": 0.1 * jax.random.normal(k_w2, (C, Cr), dtype=jnp.float32),
        "fc2_b": 0.1 * jax.random.normal(k_b2, (C,), dtype=jnp.float32),
    }

    out = channel_attention(f_n, f_n1, params)
    out = jax.block_until_ready(out)

    ref = jax.block_until_ready(reference(f_n, f_n1, params))
    assert out.shape == (B, C, H, W)
    assert jnp.allclose(out, ref, atol=1e-5, rtol=1e-5), "mismatch vs reference"

    print("KERNEL_OK")
</pallas_src>

<mosaic_0001>
module attributes {stable_mosaic.version = 11 : i64} {
  func.func @_se_kernel(%arg0: i32, %arg1: i32, %arg2: memref<2x16x64xf32, #tpu.memory_space<vmem>>, %arg3: memref<16x8xf32, #tpu.memory_space<vmem>>, %arg4: memref<1x8xf32, #tpu.memory_space<vmem>>, %arg5: memref<8x2xf32, #tpu.memory_space<vmem>>, %arg6: memref<1x2xf32, #tpu.memory_space<vmem>>, %arg7: memref<2x8xf32, #tpu.memory_space<vmem>>, %arg8: memref<1x8xf32, #tpu.memory_space<vmem>>, %arg9: memref<2x8xf32, #tpu.memory_space<vmem>>, %arg10: memref<2x16xf32, #tpu.memory_space<vmem>>) attributes {dimension_semantics = [#tpu.dimension_semantics<parallel>, #tpu.dimension_semantics<arbitrary>], iteration_bounds = array<i64: 1, 1>, scalar_prefetch = 0 : i64, scratch_operands = 1 : i64, tpu.core_type = #tpu.core_type<tc>, window_params = [{transform_indices = @transform_0, window_bounds = array<i64: 2, 16, 64>}, {pipeline_mode = #tpu.pipeline_mode<synchronous>, transform_indices = @transform_1, window_bounds = array<i64: 16, 8>}, {pipeline_mode = #tpu.pipeline_mode<synchronous>, transform_indices = @transform_2, window_bounds = array<i64: 1, 8>}, {pipeline_mode = #tpu.pipeline_mode<synchronous>, transform_indices = @transform_3, window_bounds = array<i64: 8, 2>}, {pipeline_mode = #tpu.pipeline_mode<synchronous>, transform_indices = @transform_4, window_bounds = array<i64: 1, 2>}, {pipeline_mode = #tpu.pipeline_mode<synchronous>, transform_indices = @transform_5, window_bounds = array<i64: 2, 8>}, {pipeline_mode = #tpu.pipeline_mode<synchronous>, transform_indices = @transform_6, window_bounds = array<i64: 1, 8>}, {transform_indices = @transform_7, window_bounds = array<i64: 2, 8>}]} {
    %c0_i32 = arith.constant 0 : i32
    %0 = arith.cmpi eq, %arg1, %c0_i32 : i32
    %1 = arith.extui %0 : i1 to i32
    %c0_i32_0 = arith.constant 0 : i32
    %2 = arith.cmpi ne, %1, %c0_i32_0 : i32
    scf.if %2 {
      %cst_9 = arith.constant 0.000000e+00 : f32
      %11 = vector.broadcast %cst_9 : f32 to vector<2x16xf32>
      %c0_10 = arith.constant 0 : index
      %c0_11 = arith.constant 0 : index
      %12 = vector.load %arg10[%c0_10, %c0_11] : memref<2x16xf32, #tpu.memory_space<vmem>>, vector<2x16xf32>
      tpu.vector_store %arg10[%c0_10, %c0_11], %11 {strides = array<i32>} : memref<2x16xf32, #tpu.memory_space<vmem>>, vector<2x16xf32>,
    } else {
    }
    %c0 = arith.constant 0 : index
    %c0_1 = arith.constant 0 : index
    %3 = vector.load %arg10[%c0, %c0_1] : memref<2x16xf32, #tpu.memory_space<vmem>>, vector<2x16xf32>
    %c0_2 = arith.constant 0 : index
    %c0_3 = arith.constant 0 : index
    %c0_4 = arith.constant 0 : index
    %4 = vector.load %arg2[%c0_2, %c0_3, %c0_4] : memref<2x16x64xf32, #tpu.memory_space<vmem>>, vector<2x16x64xf32>
    %cst = arith.constant dense<0.000000e+00> : vector<2x16xf32>
    %5 = vector.multi_reduction <add>, %4, %cst [2] : vector<2x16x64xf32> to vector<2x16xf32>
    %6 = arith.addf %3, %5 : vector<2x16xf32>
    %c0_5 = arith.constant 0 : index
    %c0_6 = arith.constant 0 : index
    %7 = vector.load %arg10[%c0_5, %c0_6] : memref<2x16xf32, #tpu.memory_space<vmem>>, vector<2x16xf32>
    tpu.vector_store %arg10[%c0_5, %c0_6], %6 {strides = array<i32>} : memref<2x16xf32, #tpu.memory_space<vmem>>, vector<2x16xf32>,
    %c0_i32_7 = arith.constant 0 : i32
    %8 = arith.cmpi eq, %arg1, %c0_i32_7 : i32
    %9 = arith.extui %8 : i1 to i32
    %c0_i32_8 = arith.constant 0 : i32
    %10 = arith.cmpi ne, %9, %c0_i32_8 : i32
    scf.if %10 {
      %c0_9 = arith.constant 0 : index
      %c0_10 = arith.constant 0 : index
      %11 = vector.load %arg10[%c0_9, %c0_10] : memref<2x16xf32, #tpu.memory_space<vmem>>, vector<2x16xf32>
      %cst_11 = arith.constant 1.562500e-02 : f32
      %12 = vector.broadcast %cst_11 : f32 to vector<2x16xf32>
      %13 = arith.mulf %11, %12 : vector<2x16xf32>
      %c0_12 = arith.constant 0 : index
      %c0_13 = arith.constant 0 : index
      %14 = vector.load %arg3[%c0_12, %c0_13] : memref<16x8xf32, #tpu.memory_space<vmem>>, vector<16x8xf32>
      %cst_14 = arith.constant dense<0.000000e+00> : vector<2x8xf32>
      %15 = tpu.matmul %13, %14, %cst_14 {dimension_numbers = #tpu.dot_dimension_numbers<[1], [0], [0], [1], [0, 0, 1, 1], [], []>} : vector<2x16xf32>, vector<16x8xf32>, vector<2x8xf32> -> vector<2x8xf32>
      %c0_15 = arith.constant 0 : index
      %c0_16 = arith.constant 0 : index
      %16 = vector.load %arg4[%c0_15, %c0_16] : memref<1x8xf32, #tpu.memory_space<vmem>>, vector<1x8xf32>
      %17 = vector.broadcast %16 : vector<1x8xf32> to vector<2x8xf32>
      %18 = arith.addf %15, %17 : vector<2x8xf32>
      %c0_17 = arith.constant 0 : index
      %c0_18 = arith.constant 0 : index
      %19 = vector.load %arg5[%c0_17, %c0_18] : memref<8x2xf32, #tpu.memory_space<vmem>>, vector<8x2xf32>
      %cst_19 = arith.constant dense<0.000000e+00> : vector<2x2xf32>
      %20 = tpu.matmul %18, %19, %cst_19 {dimension_numbers = #tpu.dot_dimension_numbers<[1], [0], [0], [1], [0, 0, 1, 1], [], []>} : vector<2x8xf32>, vector<8x2xf32>, vector<2x2xf32> -> vector<2x2xf32>
      %c0_20 = arith.constant 0 : index
      %c0_21 = arith.constant 0 : index
      %21 = vector.load %arg6[%c0_20, %c0_21] : memref<1x2xf32, #tpu.memory_space<vmem>>, vector<1x2xf32>
      %22 = vector.broadcast %21 : vector<1x2xf32> to vector<2x2xf32>
      %23 = arith.addf %20, %22 : vector<2x2xf32>
      %cst_22 = arith.constant 0.000000e+00 : f32
      %24 = vector.broadcast %cst_22 : f32 to vector<2x2xf32>
      %25 = arith.maximumf %23, %24 : vector<2x2xf32>
      %c0_23 = arith.constant 0 : index
      %c0_24 = arith.constant 0 : index
      %26 = vector.load %arg7[%c0_23, %c0_24] : memref<2x8xf32, #tpu.memory_space<vmem>>, vector<2x8xf32>
      %cst_25 = arith.constant dense<0.000000e+00> : vector<2x8xf32>
      %27 = tpu.matmul %25, %26, %cst_25 {dimension_numbers = #tpu.dot_dimension_numbers<[1], [0], [0], [1], [0, 0, 1, 1], [], []>} : vector<2x2xf32>, vector<2x8xf32>, vector<2x8xf32> -> vector<2x8xf32>
      %c0_26 = arith.constant 0 : index
      %c0_27 = arith.constant 0 : index
      %28 = vector.load %arg8[%c0_26, %c0_27] : memref<1x8xf32, #tpu.memory_space<vmem>>, vector<1x8xf32>
      %29 = vector.broadcast %28 : vector<1x8xf32> to vector<2x8xf32>
      %30 = arith.addf %27, %29 : vector<2x8xf32>
      %cst_28 = arith.constant 0.000000e+00 : f32
      %31 = vector.broadcast %cst_28 : f32 to vector<2x8xf32>
      %32 = arith.subf %31, %30 : vector<2x8xf32>
      %33 = math.exp %32 : vector<2x8xf32>
      %cst_29 = arith.constant 1.000000e+00 : f32
      %34 = vector.broadcast %cst_29 : f32 to vector<2x8xf32>
      %35 = arith.addf %34, %33 : vector<2x8xf32>
      %cst_30 = arith.constant 1.000000e+00 : f32
      %36 = vector.broadcast %cst_30 : f32 to vector<2x8xf32>
      %37 = arith.divf %36, %35 : vector<2x8xf32>
      %c0_31 = arith.constant 0 : index
      %c0_32 = arith.constant 0 : index
      %38 = vector.load %arg9[%c0_31, %c0_32] : memref<2x8xf32, #tpu.memory_space<vmem>>, vector<2x8xf32>
      tpu.vector_store %arg9[%c0_31, %c0_32], %37 {strides = array<i32>} : memref<2x8xf32, #tpu.memory_space<vmem>>, vector<2x8xf32>,
    } else {
    }
    return
  }
  func.func @transform_0(%arg0: i32, %arg1: i32) -> (i32, i32, i32) {
    %c0_i32 = arith.constant 0 : i32
    %c0_i32_0 = arith.constant 0 : i32
    return %arg0, %c0_i32, %arg1 : i32, i32, i32
  }
  func.func @transform_1(%arg0: i32, %arg1: i32) -> (i32, i32) {
    %c0_i32 = arith.constant 0 : i32
    %c0_i32_0 = arith.constant 0 : i32
    %c0_i32_1 = arith.constant 0 : i32
    return %c0_i32, %c0_i32_0 : i32, i32
  }
  func.func @transform_2(%arg0: i32, %arg1: i32) -> (i32, i32) {
    %c0_i32 = arith.constant 0 : i32
    %c0_i32_0 = arith.constant 0 : i32
    %c0_i32_1 = arith.constant 0 : i32
    return %c0_i32, %c0_i32_0 : i32, i32
  }
  func.func @transform_3(%arg0: i32, %arg1: i32) -> (i32, i32) {
    %c0_i32 = arith.constant 0 : i32
    %c0_i32_0 = arith.constant 0 : i32
    %c0_i32_1 = arith.constant 0 : i32
    return %c0_i32, %c0_i32_0 : i32, i32
  }
  func.func @transform_4(%arg0: i32, %arg1: i32) -> (i32, i32) {
    %c0_i32 = arith.constant 0 : i32
    %c0_i32_0 = arith.constant 0 : i32
    %c0_i32_1 = arith.constant 0 : i32
    return %c0_i32, %c0_i32_0 : i32, i32
  }
  func.func @transform_5(%arg0: i32, %arg1: i32) -> (i32, i32) {
    %c0_i32 = arith.constant 0 : i32
    %c0_i32_0 = arith.constant 0 : i32
    %c0_i32_1 = arith.constant 0 : i32
    return %c0_i32, %c0_i32_0 : i32, i32
  }
  func.func @transform_6(%arg0: i32, %arg1: i32) -> (i32, i32) {
    %c0_i32 = arith.constant 0 : i32
    %c0_i32_0 = arith.constant 0 : i32
    %c0_i32_1 = arith.constant 0 : i32
    return %c0_i32, %c0_i32_0 : i32, i32
  }
  func.func @transform_7(%arg0: i32, %arg1: i32) -> (i32, i32) {
    %c0_i32 = arith.constant 0 : i32
    %c0_i32_0 = arith.constant 0 : i32
    return %arg0, %c0_i32 : i32, i32
  }
}

</mosaic_0001>

<llo_original>
// kernel: tpu_custom_call.1
$region0: #{tpu_custom_call.1}
  #allocation0 [shape = 'u32[]', space=smem, size = 0x4, offset = 0x4, fixed_abs, tag = 'smem constant byte address 0x4 - core index']
  #allocation1 [shape = 'u32[144,128]{1,0:T(1,128)}', space=vmem, size = 0x12000, scoped, tag = 'internal scratch']
  #allocation2 [shape = 'f32[2,16]{1,0:T(2,128)}', space=vmem, size = 0x400, scoped, tag = 'scratch operand']
  %s0 = inlined_call_operand.vmem [shape: f32[2,16,64], index: 0, kind: input, shape index: {}]
  %s1 = inlined_call_operand.vmem [shape: f32[16,8], index: 1, kind: input, shape index: {}]
  %s2 = inlined_call_operand.vmem [shape: f32[1,8], index: 2, kind: input, shape index: {}]
  %s3 = inlined_call_operand.vmem [shape: f32[8,2], index: 3, kind: input, shape index: {}]
  %s4 = inlined_call_operand.vmem [shape: f32[1,2], index: 4, kind: input, shape index: {}]
  %s5 = inlined_call_operand.vmem [shape: f32[2,8], index: 5, kind: input, shape index: {}]
  %s6 = inlined_call_operand.vmem [shape: f32[1,8], index: 6, kind: input, shape index: {}]
  %s7 = inlined_call_operand.hbm [shape: f32[2,8], index: 7, kind: output, shape index: {}]
  %s8 = sld [smem:[#allocation0]]
  $region46: #{tpu_custom_call.1} parent=0
    _
  %s10 = ssub.s32 1, %s8
  %s11 = scalar_select 0, %s10, %s8
  $region1: #{tpu_custom_call.1} parent=0
    #allocation3 [shape = 'u8[1024]{0}', space=vmem, size = 0x400, scoped, tag = 'output window, operand 0, single buffered']
    #allocation4 [shape = 's32[1]{0}', space=sflag, size = 0x4, scoped, tag = 'scoped memory for tpu_custom_call.1']
    %12 = vsyncpa [#allocation4], 0
    // Predicated region
    $region2: #{tpu_custom_call.1} parent=1 // pred_check
      _
    $region3: #{tpu_custom_call.1} parent=1 // pred_check_branch
      %14 = sbr.rel (0) target = $region5
    $region4: #{tpu_custom_call.1} parent=1 // pred_region
      _
    $region5: #{tpu_custom_call.1} parent=1 // pred_fallthru
      _
    // Predicated region
    $region6: #{tpu_custom_call.1} parent=1 // pred_check
      _
    $region7: #{tpu_custom_call.1} parent=1 // pred_check_branch
      %16 = sbr.rel (0) target = $region9
    $region8: #{tpu_custom_call.1} parent=1 // pred_region
      _
    $region9: #{tpu_custom_call.1} parent=1 // pred_fallthru
      _
    // Predicated region
    $region10: #{tpu_custom_call.1} parent=1 // pred_check
      _
    $region11: #{tpu_custom_call.1} parent=1 // pred_check_branch
      %18 = sbr.rel (0) target = $region13
    $region12: #{tpu_custom_call.1} parent=1 // pred_region
      _
    $region13: #{tpu_custom_call.1} parent=1 // pred_fallthru
      _
    // Predicated region
    $region14: #{tpu_custom_call.1} parent=1 // pred_check
      _
    $region15: #{tpu_custom_call.1} parent=1 // pred_check_branch
      %20 = sbr.rel (0) target = $region17
    $region16: #{tpu_custom_call.1} parent=1 // pred_region
      _
    $region17: #{tpu_custom_call.1} parent=1 // pred_fallthru
      _
    // Predicated region
    $region18: #{tpu_custom_call.1} parent=1 // pred_check
      _
    $region19: #{tpu_custom_call.1} parent=1 // pred_check_branch
      %22 = sbr.rel (0) target = $region21
    $region20: #{tpu_custom_call.1} parent=1 // pred_region
      _
    $region21: #{tpu_custom_call.1} parent=1 // pred_fallthru
      _
    // Predicated region
    $region22: #{tpu_custom_call.1} parent=1 // pred_check
      _
    $region23: #{tpu_custom_call.1} parent=1 // pred_check_branch
      %24 = sbr.rel (0) target = $region25
    $region24: #{tpu_custom_call.1} parent=1 // pred_region
      _
    $region25: #{tpu_custom_call.1} parent=1 // pred_fallthru
      _
    // Predicated region
    $region26: #{tpu_custom_call.1} parent=1 // pred_check
      _
    $region27: #{tpu_custom_call.1} parent=1 // pred_check_branch
      %26 = sbr.rel (0) target = $region29
    $region28: #{tpu_custom_call.1} parent=1 // pred_region
      _
    $region29: #{tpu_custom_call.1} parent=1 // pred_fallthru
      _
    %p27 = scmp.eq.s32.totalorder 0, 0
    // Predicated region
    $region30: #{tpu_custom_call.1} parent=1 // pred_check
      %p28 = pneg %p27
    $region31: #{tpu_custom_call.1} parent=1 // pred_check_branch
      %30 = sbr.rel (%p28) target = $region33
    $region32: #{tpu_custom_call.1} parent=1 // pred_region
      %vm31 = vcmask 123904
      %32 = vst.msk [vmem:[#allocation2] sm:$0x3] %vm31, 0.0
    $region33: #{tpu_custom_call.1} parent=1 // pred_fallthru
      _
    %v33 = vld [vmem:[#allocation2] sm:$0x3]
    %v34 = vld [vmem:[%s0] sm:$0xff]
    %v35 = vld [vmem:[%s0 + $0x8] sm:$0xff]
    %v36 = vld [vmem:[%s0 + $0x10] sm:$0xff]
    %v37 = vld [vmem:[%s0 + $0x18] sm:$0xff]
    %vm38 = vcmask 523264
    %v39 = vsel %vm38, %v34, 0.0
    %40 = vadd.xlane.f32.xlu0 %v39
    %v41 = vpop.xlane.xlu0 %40
    %v42 = vsel %vm38, %v35, 0.0
    %43 = vadd.xlane.f32.xlu0 %v42
    %v44 = vpop.xlane.xlu0 %43
    %v45 = vsel %vm38, %v36, 0.0
    %46 = vadd.xlane.f32.xlu0 %v45
    %v47 = vpop.xlane.xlu0 %46
    %v48 = vsel %vm38, %v37, 0.0
    %49 = vadd.xlane.f32.xlu0 %v48
    %v50 = vpop.xlane.xlu0 %49
    %v55 = vlaneseq
    %v56 = vand.u32 %v55, 127
    %v57 = vlaneseq
    %v58 = vshrl.u32 %v57, 7
    %v59 = vsub.s32 %v56, %v58
    %v60 = vrot.slane %v41, %v59
    %v61 = vadd.s32 %v56, 4294967288
    %v62 = vlaneseq
    %v63 = vshrl.u32 %v62, 7
    %v64 = vsub.s32 %v61, %v63
    %v65 = vrot.slane %v44, %v64
    %vm66 = vcmask 130112
    %v67 = vsel %vm66, %v65, %v60
    %v68 = vlaneseq
    %v69 = vshrl.u32 %v68, 7
    %v70 = vsub.s32 %v56, %v69
    %v71 = vrot.slane %v47, %v70
    %v72 = vlaneseq
    %v73 = vshrl.u32 %v72, 7
    %v74 = vsub.s32 %v61, %v73
    %v75 = vrot.slane %v50, %v74
    %v76 = vsel %vm66, %v75, %v71
    %vm77 = vcmask 1041409
    %v78 = vsel %vm77, %v76, %v67
    %v80 = vadd.f32 %v33, %v78
    %vm81 = vcmask 123904
    %82 = vst.msk [vmem:[#allocation2] sm:$0x3] %vm81, %v80
    // Predicated region
    $region34: #{tpu_custom_call.1} parent=1 // pred_check
      %p83 = pneg %p27
    $region35: #{tpu_custom_call.1} parent=1 // pred_check_branch
      %85 = sbr.rel (%p83) target = $region37
    $region36: #{tpu_custom_call.1} parent=1 // pred_region
      %v86 = vld [vmem:[#allocation2] sm:$0x3]
      %v87 = vmul.f32 %v86, 0.015625
      %v88 = vld [vmem:[%s1] sm:$0xff]
      %v89 = vld [vmem:[%s1 + $0x8] sm:$0xff]
      %v90 = vld [vmem:[%s2] sm:$0x1]
      %v92 = vlaneseq
      %v93 = vshrl.u32 %v92, 7
      %v94 = vsub.s32 0, %v93
      %v95 = vrot.slane %v90, %v94
      %vm97 = vcmask 130048
      %v99 = vsel %vm97, %v87, 0
      %101 = vmatprep.subr.mxu0 0.0
      %102 = vmatpush1.msra.mxu0 0.0
      %103 = vmatprep.subr.mxu0 0.0
      %104 = vmatpush1.msra.mxu0 0.0
      %105 = vmatprep.subr.mxu0 0.0
      %106 = vmatpush1.msra.mxu0 0.0
      %107 = vmatprep.subr.mxu0 0.0
      %108 = vmatpush1.msra.mxu0 0.0
      %109 = vmatprep.subr.mxu0 0.0
      %110 = vmatpush1.msra.mxu0 0.0
      %111 = vmatprep.subr.mxu0 0.0
      %112 = vmatpush1.msra.mxu0 0.0
      %113 = vmatprep.subr.mxu0 0.0
      %114 = vmatpush1.msra.mxu0 0.0
      %115 = vmatprep.subr.mxu0 0.0
      %116 = vmatpush1.msra.mxu0 0.0
      %117 = vmatprep.subr.mxu0 0.0
      %118 = vmatpush1.msra.mxu0 0.0
      %119 = vmatprep.subr.mxu0 0.0
      %120 = vmatpush1.msra.mxu0 0.0
      %121 = vmatprep.subr.mxu0 0.0
      %122 = vmatpush1.msra.mxu0 0.0
      %123 = vmatprep.subr.mxu0 0.0
      %124 = vmatpush1.msra.mxu0 0.0
      %125 = vmatprep.subr.mxu0 0.0
      %126 = vmatpush1.msra.mxu0 0.0
      %127 = vmatprep.subr.mxu0 0.0
      %128 = vmatpush1.msra.mxu0 0.0
      %129 = vmatprep.subr.mxu0 0.0
      %130 = vmatpush1.msra.mxu0 %v89
      %131 = vmatprep.subr.mxu0 0.0
      %132 = vmatpush1.msra.mxu0 %v88
      %133 = vmatprep.subr.mxu0 0.0
      %134 = vmatpush2.msra.mxu0 0.0
      %135 = vmatprep.subr.mxu0 0.0
      %136 = vmatpush2.msra.mxu0 0.0
      %137 = vmatprep.subr.mxu0 0.0
      %138 = vmatpush2.msra.mxu0 0.0
      %139 = vmatprep.subr.mxu0 0.0
      %140 = vmatpush2.msra.mxu0 0.0
      %141 = vmatprep.subr.mxu0 0.0
      %142 = vmatpush2.msra.mxu0 0.0
      %143 = vmatprep.subr.mxu0 0.0
      %144 = vmatpush2.msra.mxu0 0.0
      %145 = vmatprep.subr.mxu0 0.0
      %146 = vmatpush2.msra.mxu0 0.0
      %147 = vmatprep.subr.mxu0 0.0
      %148 = vmatpush2.msra.mxu0 0.0
      %149 = vmatprep.subr.mxu0 0.0
      %150 = vmatpush2.msra.mxu0 0.0
      %151 = vmatprep.subr.mxu0 0.0
      %152 = vmatpush2.msra.mxu0 0.0
      %153 = vmatprep.subr.mxu0 0.0
      %154 = vmatpush2.msra.mxu0 0.0
      %155 = vmatprep.subr.mxu0 0.0
      %156 = vmatpush2.msra.mxu0 0.0
      %157 = vmatprep.subr.mxu0 0.0
      %158 = vmatpush2.msra.mxu0 0.0
      %159 = vmatprep.subr.mxu0 0.0
      %160 = vmatpush2.msra.mxu0 0.0
      %161 = vmatprep.subr.mxu0 0.0
      %162 = vmatpush2.msra.mxu0 0.0
      %163 = vmatprep.subr.mxu0 0.0
      %164 = vmatpush2.msra.mxu0 0.0
      %165 = vmatprep.mubr.f32.mxu0 0.0
      %166 = vmatmul.mubr.f32.gmra.mxu0 %v99
      %v167 = vpop.f32.mrf.mxu0
      %v168 = vadd.f32 %v95, %v167
      %v169 = vpop.f32.mrf.mxu0
      %170 = vdwg.mxu0
      %v171 = vld [vmem:[%s3] sm:$0xff]
      %v172 = vld [vmem:[%s4] sm:$0x1]
      %v174 = vlaneseq
      %v175 = vshrl.u32 %v174, 7
      %v176 = vsub.s32 0, %v175
      %v177 = vrot.slane %v172, %v176
      %vm179 = vcmask 64512
      %v181 = vsel %vm179, %v168, 0
      %183 = vmatprep.subr.mxu0 0.0
      %184 = vmatpush1.msra.mxu0 0.0
      %185 = vmatprep.subr.mxu0 0.0
      %186 = vmatpush1.msra.mxu0 0.0
      %187 = vmatprep.subr.mxu0 0.0
      %188 = vmatpush1.msra.mxu0 0.0
      %189 = vmatprep.subr.mxu0 0.0
      %190 = vmatpush1.msra.mxu0 0.0
      %191 = vmatprep.subr.mxu0 0.0
      %192 = vmatpush1.msra.mxu0 0.0
      %193 = vmatprep.subr.mxu0 0.0
      %194 = vmatpush1.msra.mxu0 0.0
      %195 = vmatprep.subr.mxu0 0.0
      %196 = vmatpush1.msra.mxu0 0.0
      %197 = vmatprep.subr.mxu0 0.0
      %198 = vmatpush1.msra.mxu0 0.0
      %199 = vmatprep.subr.mxu0 0.0
      %200 = vmatpush1.msra.mxu0 0.0
      %201 = vmatprep.subr.mxu0 0.0
      %202 = vmatpush1.msra.mxu0 0.0
      %203 = vmatprep.subr.mxu0 0.0
      %204 = vmatpush1.msra.mxu0 0.0
      %205 = vmatprep.subr.mxu0 0.0
      %206 = vmatpush1.msra.mxu0 0.0
      %207 = vmatprep.subr.mxu0 0.0
      %208 = vmatpush1.msra.mxu0 0.0
      %209 = vmatprep.subr.mxu0 0.0
      %210 = vmatpush1.msra.mxu0 0.0
      %211 = vmatprep.subr.mxu0 0.0
      %212 = vmatpush1.msra.mxu0 0.0
      %213 = vmatprep.subr.mxu0 0.0
      %214 = vmatpush1.msra.mxu0 %v171
      %215 = vmatprep.subr.mxu0 0.0
      %216 = vmatpush2.msra.mxu0 0.0
      %217 = vmatprep.subr.mxu0 0.0
      %218 = vmatpush2.msra.mxu0 0.0
      %219 = vmatprep.subr.mxu0 0.0
      %220 = vmatpush2.msra.mxu0 0.0
      %221 = vmatprep.subr.mxu0 0.0
      %222 = vmatpush2.msra.mxu0 0.0
      %223 = vmatprep.subr.mxu0 0.0
      %224 = vmatpush2.msra.mxu0 0.0
      %225 = vmatprep.subr.mxu0 0.0
      %226 = vmatpush2.msra.mxu0 0.0
      %227 = vmatprep.subr.mxu0 0.0
      %228 = vmatpush2.msra.mxu0 0.0
      %229 = vmatprep.subr.mxu0 0.0
      %230 = vmatpush2.msra.mxu0 0.0
      %231 = vmatprep.subr.mxu0 0.0
      %232 = vmatpush2.msra.mxu0 0.0
      %233 = vmatprep.subr.mxu0 0.0
      %234 = vmatpush2.msra.mxu0 0.0
      %235 = vmatprep.subr.mxu0 0.0
      %236 = vmatpush2.msra.mxu0 0.0
      %237 = vmatprep.subr.mxu0 0.0
      %238 = vmatpush2.msra.mxu0 0.0
      %239 = vmatprep.subr.mxu0 0.0
      %240 = vmatpush2.msra.mxu0 0.0
      %241 = vmatprep.subr.mxu0 0.0
      %242 = vmatpush2.msra.mxu0 0.0
      %243 = vmatprep.subr.mxu0 0.0
      %244 = vmatpush2.msra.mxu0 0.0
      %245 = vmatprep.subr.mxu0 0.0
      %246 = vmatpush2.msra.mxu0 0.0
      %247 = vmatprep.mubr.f32.mxu0 0.0
      %248 = vmatmul.mubr.f32.gmra.mxu0 %v181
      %v249 = vpop.f32.mrf.mxu0
      %v250 = vadd.f32 %v177, %v249
      %v251 = vpop.f32.mrf.mxu0
      %252 = vdwg.mxu0
      %v253 = vmax.f32 %v250, 0.0
      %v254 = vld [vmem:[%s5] sm:$0x3]
      %v255 = vld [vmem:[%s6] sm:$0x1]
      %v257 = vlaneseq
      %v258 = vshrl.u32 %v257, 7
      %v259 = vsub.s32 0, %v258
      %v260 = vrot.slane %v255, %v259
      %vm262 = vcmask 15360
      %v264 = vsel %vm262, %v253, 0
      %vm266 = vcmask 1041408
      %v268 = vsel %vm266, %v254, 0
      %270 = vmatprep.subr.mxu0 0.0
      %271 = vmatpush1.msra.mxu0 0.0
      %272 = vmatprep.subr.mxu0 0.0
      %273 = vmatpush1.msra.mxu0 0.0
      %274 = vmatprep.subr.mxu0 0.0
      %275 = vmatpush1.msra.mxu0 0.0
      %276 = vmatprep.subr.mxu0 0.0
      %277 = vmatpush1.msra.mxu0 0.0
      %278 = vmatprep.subr.mxu0 0.0
      %279 = vmatpush1.msra.mxu0 0.0
      %280 = vmatprep.subr.mxu0 0.0
      %281 = vmatpush1.msra.mxu0 0.0
      %282 = vmatprep.subr.mxu0 0.0
      %283 = vmatpush1.msra.mxu0 0.0
      %284 = vmatprep.subr.mxu0 0.0
      %285 = vmatpush1.msra.mxu0 0.0
      %286 = vmatprep.subr.mxu0 0.0
      %287 = vmatpush1.msra.mxu0 0.0
      %288 = vmatprep.subr.mxu0 0.0
      %289 = vmatpush1.msra.mxu0 0.0
      %290 = vmatprep.subr.mxu0 0.0
      %291 = vmatpush1.msra.mxu0 0.0
      %292 = vmatprep.subr.mxu0 0.0
      %293 = vmatpush1.msra.mxu0 0.0
      %294 = vmatprep.subr.mxu0 0.0
      %295 = vmatpush1.msra.mxu0 0.0
      %296 = vmatprep.subr.mxu0 0.0
      %297 = vmatpush1.msra.mxu0 0.0
      %298 = vmatprep.subr.mxu0 0.0
      %299 = vmatpush1.msra.mxu0 0.0
      %300 = vmatprep.subr.mxu0 0.0
      %301 = vmatpush1.msra.mxu0 %v268
      %302 = vmatprep.subr.mxu0 0.0
      %303 = vmatpush2.msra.mxu0 0.0
      %304 = vmatprep.subr.mxu0 0.0
      %305 = vmatpush2.msra.mxu0 0.0
      %306 = vmatprep.subr.mxu0 0.0
      %307 = vmatpush2.msra.mxu0 0.0
      %308 = vmatprep.subr.mxu0 0.0
      %309 = vmatpush2.msra.mxu0 0.0
      %310 = vmatprep.subr.mxu0 0.0
      %311 = vmatpush2.msra.mxu0 0.0
      %312 = vmatprep.subr.mxu0 0.0
      %313 = vmatpush2.msra.mxu0 0.0
      %314 = vmatprep.subr.mxu0 0.0
      %315 = vmatpush2.msra.mxu0 0.0
      %316 = vmatprep.subr.mxu0 0.0
      %317 = vmatpush2.msra.mxu0 0.0
      %318 = vmatprep.subr.mxu0 0.0
      %319 = vmatpush2.msra.mxu0 0.0
      %320 = vmatprep.subr.mxu0 0.0
      %321 = vmatpush2.msra.mxu0 0.0
      %322 = vmatprep.subr.mxu0 0.0
      %323 = vmatpush2.msra.mxu0 0.0
      %324 = vmatprep.subr.mxu0 0.0
      %325 = vmatpush2.msra.mxu0 0.0
      %326 = vmatprep.subr.mxu0 0.0
      %327 = vmatpush2.msra.mxu0 0.0
      %328 = vmatprep.subr.mxu0 0.0
      %329 = vmatpush2.msra.mxu0 0.0
      %330 = vmatprep.subr.mxu0 0.0
      %331 = vmatpush2.msra.mxu0 0.0
      %332 = vmatprep.subr.mxu0 0.0
      %333 = vmatpush2.msra.mxu0 0.0
      %334 = vmatprep.mubr.f32.mxu0 0.0
      %335 = vmatmul.mubr.f32.gmra.mxu0 %v264
      %v336 = vpop.f32.mrf.mxu0
      %v337 = vadd.f32 %v260, %v336
      %v338 = vpop.f32.mrf.mxu0
      %339 = vdwg.mxu0
      %v340 = vsub.f32 0.0, %v337
      %v341 = vmul.f32 %v340, 1.442695
      %v342 = vpow.pop %v341
      %v343 = vadd.f32 %v342, 1.0
      %v344 = vrcp.pop %v343
      %v345 = vmul.f32 1.0, %v344
      %vm346 = vcmask 58368
      %347 = vst.msk [vmem:[#allocation3] sm:$0x3] %vm346, %v345
    $region37: #{tpu_custom_call.1} parent=1 // pred_fallthru
      _
    // Predicated region
    $region38: #{tpu_custom_call.1} parent=1 // pred_check
      _
    $region39: #{tpu_custom_call.1} parent=1 // pred_check_branch
      %349 = sbr.rel (0) target = $region41
    $region40: #{tpu_custom_call.1} parent=1 // pred_region
      %s351 = ssub.s32 32, 32
      %352 = vsyncadd [#allocation4], %s351
      %s354 = sshll.u32 [#allocation3], 4
      %s355 = int_to_ptr.vmem [resolvable:$true] %s354
      %357 = dma.vmem_to_hbm [thread:$0]  %s355, 32, %s7, [#allocation4]
    $region41: #{tpu_custom_call.1} parent=1 // pred_fallthru
      _
    // Predicated region
    $region42: #{tpu_custom_call.1} parent=1 // pred_check
      _
    $region43: #{tpu_custom_call.1} parent=1 // pred_check_branch
      %359 = sbr.rel (0) target = $region45
    $region44: #{tpu_custom_call.1} parent=1 // pred_region
      %360 = dma.done [#allocation4], 32
    $region45: #{tpu_custom_call.1} parent=1 // pred_fallthru
      _
    %361 = vsyncpa [#allocation4], 1

</llo_original>
